<compile_context>
chip_gen: v5e
topology: v5e:2x2
jax: 0.10.0
libtpu: 0.0.40
codegen_flags: <defaults>
</compile_context>

<pallas_src>
import functools

import jax
import jax.numpy as jnp
from jax import lax
from jax.experimental import pallas as pl
from jax.experimental.pallas import tpu as pltpu

PAD_VAL = 1000000000.0  # same constant as the PyTorch module


def _roundup(x, n):
    return ((x + n - 1) // n) * n


def _choose_tiling(bc, H, W, dtype):
    """Pick (bc_tile, bc_chunk, n_chunks, grid_steps, vmem_limit_bytes)."""
    hw = H * W
    itemsize = jnp.dtype(dtype).itemsize
    sub = max(8, 32 // itemsize)          # sublanes per vreg (8 f32, 16 bf16, 32 i8)
    lane_w = _roundup(hw, 128)            # physical lane footprint of one slice

    # Chunk size: keep each live per-chunk value within ~4 vregs (dtype aware),
    # rounded to a sublane-tile multiple so block shapes stay (8,128)-friendly.
    elems_per_vreg = sub * 128
    chunk_cap = max(1, (4 * elems_per_vreg) // lane_w)
    chunk_cap = max(sub, (chunk_cap // sub) * sub)

    # VMEM: input + output blocks, each double-buffered -> 4 copies, ~20 MiB cap
    # (fits the 32 MiB scoped default on v6e/v7x; raised explicitly below).
    per_buf_budget = (20 * 1024 * 1024) // 4
    max_tile = max(sub, per_buf_budget // (lane_w * itemsize))

    # Prefer >= 4 grid steps (2 per TensorCore on v7x) when there is enough
    # work; never shrink a block below one sublane tile.
    if bc >= 4 * sub:
        min_steps = 4
    elif bc >= 2 * sub:
        min_steps = 2
    else:
        min_steps = 1
    steps = max(min_steps, pl.cdiv(bc, max_tile))
    bc_tile = pl.cdiv(bc, steps)
    if bc_tile < bc:
        bc_tile = min(bc, max(sub, (bc_tile // sub) * sub))

    bc_chunk = min(bc_tile, chunk_cap)
    n_chunks = pl.cdiv(bc_tile, bc_chunk)
    steps = pl.cdiv(bc, bc_tile)

    blk_bytes = _roundup(bc_tile, sub) * lane_w * itemsize   # physical, padded
    vmem_limit = int(min(64 * 1024 * 1024, max(32 * 1024 * 1024, 5 * blk_bytes)))
    return bc_tile, bc_chunk, n_chunks, steps, vmem_limit


def _erosion_kernel(x_ref, o_ref, *, m, H, W, bc, bc_tile, bc_chunk, n_chunks):
    hw = H * W
    dtype = o_ref.dtype

    # Hoisted once per grid step: index plane, border masks, PAD constant.
    # All per-chunk work is rolls (XLU) + selects/mins (VPU) on vreg values.
    flat = lax.broadcasted_iota(jnp.int32, (bc_chunk, hw), 1)
    col = flat % W
    pad = jnp.full((bc_chunk, hw), PAD_VAL, dtype=dtype)
    h_masks = [(col < (W - d), col >= d) for d in range(1, m + 1)]
    v_masks = [(flat < (H - d) * W, flat >= d * W) for d in range(1, m + 1)]

    # Number of rows of this block that lie inside the (bc, hw) array.
    valid = bc - pl.program_id(0) * bc_tile

    def erode(v):
        # Separable min: 1x(2m+1) pass along columns, then (2m+1)x1 along rows.
        hmin = v
        for d in range(1, m + 1):
            fwd = pltpu.roll(v, shift=(hw - d) % hw, axis=1)        # x[i, j+d]
            hmin = jnp.minimum(hmin, jnp.where(h_masks[d - 1][0], fwd, pad))
            bwd = pltpu.roll(v, shift=d % hw, axis=1)               # x[i, j-d]
            hmin = jnp.minimum(hmin, jnp.where(h_masks[d - 1][1], bwd, pad))
        res = hmin
        for d in range(1, m + 1):
            dn = pltpu.roll(hmin, shift=(hw - d * W) % hw, axis=1)  # h[i+d, j]
            res = jnp.minimum(res, jnp.where(v_masks[d - 1][0], dn, pad))
            up = pltpu.roll(hmin, shift=(d * W) % hw, axis=1)       # h[i-d, j]
            res = jnp.minimum(res, jnp.where(v_masks[d - 1][1], up, pad))
        return res

    last_start = bc_tile - bc_chunk   # static, >= 0

    def chunk_body(c, carry):
        # Clamp so every chunk stays inside the block (tail chunk may overlap
        # the previous one; overlapping rows recompute the same values).
        start = jnp.minimum(c * bc_chunk, last_start)

        @pl.when(start < valid)   # skip chunks entirely past the array end
        def _():
            v = x_ref[pl.ds(start, bc_chunk), :]
            o_ref[pl.ds(start, bc_chunk), :] = erode(v)

        return carry

    lax.fori_loop(0, n_chunks, chunk_body, 0, unroll=True)


def erosion2d(x: jax.Array, m: int = 1) -> jax.Array:
    """Equivalent of Erosion2d(m).forward(x) for NCHW input."""
    B, C, H, W = x.shape
    k = 2 * m + 1
    bc = B * C
    hw = H * W
    itemsize = jnp.dtype(x.dtype).itemsize

    bc_tile, bc_chunk, n_chunks, steps, vmem_limit = _choose_tiling(
        bc, H, W, x.dtype)

    kernel = functools.partial(
        _erosion_kernel, m=m, H=H, W=W, bc=bc,
        bc_tile=bc_tile, bc_chunk=bc_chunk, n_chunks=n_chunks)

    out = pl.pallas_call(
        kernel,
        out_shape=jax.ShapeDtypeStruct((bc, hw), x.dtype),
        grid=(steps,),
        in_specs=[pl.BlockSpec((bc_tile, hw), lambda i: (i, 0))],
        out_specs=pl.BlockSpec((bc_tile, hw), lambda i: (i, 0)),
        compiler_params=pltpu.CompilerParams(
            dimension_semantics=("parallel",),
            vmem_limit_bytes=vmem_limit,
        ),
        cost_estimate=pl.CostEstimate(
            flops=2 * (k - 1) * bc * hw,
            transcendentals=0,
            bytes_accessed=2 * bc * hw * itemsize,
        ),
    )(x.reshape(bc, hw))   # reshape is free: (bc, H, W) HBM buffer is contiguous

    return out.reshape(B, C, H, W)


def erosion2d_ref(x: jax.Array, m: int = 1) -> jax.Array:
    """Pure-jnp reference matching the PyTorch forward."""
    B, C, H, W = x.shape
    k = 2 * m + 1
    x_pad = jnp.pad(
        x, ((0, 0), (0, 0), (m, m), (m, m)), mode="constant",
        constant_values=PAD_VAL,
    )
    windows = [
        x_pad[:, :, di:di + H, dj:dj + W]
        for di in range(k) for dj in range(k)
    ]
    return jnp.min(jnp.stack(windows, axis=2), axis=2)


if __name__ == "__main__":
    key = jax.random.PRNGKey(0)
    B, C, H, W = 2, 4, 16, 16
    x = jax.random.normal(key, (B, C, H, W), dtype=jnp.float32)

    out = jax.block_until_ready(erosion2d(x, m=1))
    ref = erosion2d_ref(x, m=1)

    assert out.shape == (B, C, H, W)
    assert out.dtype == jnp.float32
    assert jnp.allclose(out, ref), "Pallas erosion does not match reference"

    print("KERNEL_OK")
</pallas_src>

<mosaic_0001>
module attributes {stable_mosaic.version = 11 : i64} {
  func.func @_erosion_kernel(%arg0: i32, %arg1: memref<8x256xf32, #tpu.memory_space<vmem>>, %arg2: memref<8x256xf32, #tpu.memory_space<vmem>>) attributes {dimension_semantics = [#tpu.dimension_semantics<parallel>], iteration_bounds = array<i64: 1>, scalar_prefetch = 0 : i64, scratch_operands = 0 : i64, tpu.core_type = #tpu.core_type<tc>, window_params = [{transform_indices = @transform_0, window_bounds = array<i64: 8, 256>}, {transform_indices = @transform_1, window_bounds = array<i64: 8, 256>}]} {
    %0 = tpu.iota {dimensions = array<i32: 1>} : vector<8x256xi32>
    %c16_i32 = arith.constant 16 : i32
    %c0_i32 = arith.constant 0 : i32
    %1 = arith.cmpi eq, %c16_i32, %c0_i32 : i32
    %c1_i32 = arith.constant 1 : i32
    %2 = arith.select %1, %c1_i32, %c16_i32 : i32
    %3 = vector.broadcast %2 : i32 to vector<8x256xi32>
    %4 = arith.remsi %0, %3 : vector<8x256xi32>
    %c0_i32_0 = arith.constant 0 : i32
    %5 = vector.broadcast %c0_i32_0 : i32 to vector<8x256xi32>
    %6 = arith.cmpi ne, %4, %5 : vector<8x256xi32>
    %c0_i32_1 = arith.constant 0 : i32
    %7 = vector.broadcast %c0_i32_1 : i32 to vector<8x256xi32>
    %8 = arith.cmpi slt, %4, %7 : vector<8x256xi32>
    %c0_i32_2 = arith.constant 0 : i32
    %9 = arith.cmpi slt, %2, %c0_i32_2 : i32
    %10 = vector.broadcast %9 : i1 to vector<8x256xi1>
    %11 = vector.broadcast %10 : vector<8x256xi1> to vector<8x256xi1>
    %12 = arith.xori %8, %11 : vector<8x256xi1>
    %13 = arith.andi %12, %6 : vector<8x256xi1>
    %14 = vector.broadcast %2 : i32 to vector<8x256xi32>
    %15 = arith.addi %4, %14 : vector<8x256xi32>
    %16 = arith.select %13, %15, %4 : vector<8x256xi1>, vector<8x256xi32>
    %cst = arith.constant 1.000000e+09 : f32
    %17 = vector.broadcast %cst : f32 to vector<8x256xf32>
    %c15_i32 = arith.constant 15 : i32
    %18 = vector.broadcast %c15_i32 : i32 to vector<8x256xi32>
    %19 = arith.cmpi slt, %16, %18 : vector<8x256xi32>
    %c1_i32_3 = arith.constant 1 : i32
    %20 = vector.broadcast %c1_i32_3 : i32 to vector<8x256xi32>
    %21 = arith.cmpi sge, %16, %20 : vector<8x256xi32>
    %c240_i32 = arith.constant 240 : i32
    %22 = vector.broadcast %c240_i32 : i32 to vector<8x256xi32>
    %23 = arith.cmpi slt, %0, %22 : vector<8x256xi32>
    %c16_i32_4 = arith.constant 16 : i32
    %24 = vector.broadcast %c16_i32_4 : i32 to vector<8x256xi32>
    %25 = arith.cmpi sge, %0, %24 : vector<8x256xi32>
    %c8_i32 = arith.constant 8 : i32
    %26 = arith.muli %arg0, %c8_i32 : i32
    %c8_i32_5 = arith.constant 8 : i32
    %27 = arith.subi %c8_i32_5, %26 : i32
    %c0_i32_6 = arith.constant 0 : i32
    %c8_i32_7 = arith.constant 8 : i32
    %28 = arith.muli %c0_i32_6, %c8_i32_7 : i32
    %c0_i32_8 = arith.constant 0 : i32
    %29 = arith.minsi %28, %c0_i32_8 : i32
    %30 = arith.cmpi slt, %29, %27 : i32
    %31 = arith.extui %30 : i1 to i32
    %c0_i32_9 = arith.constant 0 : i32
    %32 = arith.cmpi ne, %31, %c0_i32_9 : i32
    scf.if %32 {
      %33 = arith.index_cast %29 : i32 to index
      %c0 = arith.constant 0 : index
      %34 = vector.load %arg1[%33, %c0] : memref<8x256xf32, #tpu.memory_space<vmem>>, vector<8x256xf32>
      %c255_i32 = arith.constant 255 : i32
      %35 = tpu.dynamic_rotate %34 by %c255_i32 dim 1 : vector<8x256xf32>, i32 -> vector<8x256xf32>
      %36 = arith.select %19, %35, %17 : vector<8x256xi1>, vector<8x256xf32>
      %37 = arith.minimumf %34, %36 : vector<8x256xf32>
      %c1_i32_11 = arith.constant 1 : i32
      %38 = tpu.dynamic_rotate %34 by %c1_i32_11 dim 1 : vector<8x256xf32>, i32 -> vector<8x256xf32>
      %39 = arith.select %21, %38, %17 : vector<8x256xi1>, vector<8x256xf32>
      %40 = arith.minimumf %37, %39 : vector<8x256xf32>
      %c240_i32_12 = arith.constant 240 : i32
      %41 = tpu.dynamic_rotate %40 by %c240_i32_12 dim 1 : vector<8x256xf32>, i32 -> vector<8x256xf32>
      %42 = arith.select %23, %41, %17 : vector<8x256xi1>, vector<8x256xf32>
      %43 = arith.minimumf %40, %42 : vector<8x256xf32>
      %c16_i32_13 = arith.constant 16 : i32
      %44 = tpu.dynamic_rotate %40 by %c16_i32_13 dim 1 : vector<8x256xf32>, i32 -> vector<8x256xf32>
      %45 = arith.select %25, %44, %17 : vector<8x256xi1>, vector<8x256xf32>
      %46 = arith.minimumf %43, %45 : vector<8x256xf32>
      %47 = arith.index_cast %29 : i32 to index
      %c0_14 = arith.constant 0 : index
      %48 = vector.load %arg2[%47, %c0_14] : memref<8x256xf32, #tpu.memory_space<vmem>>, vector<8x256xf32>
      tpu.vector_store %arg2[%47, %c0_14], %46 {strides = array<i32>} : memref<8x256xf32, #tpu.memory_space<vmem>>, vector<8x256xf32>,
    } else {
    }
    %c1_i32_10 = arith.constant 1 : i32
    return
  }
  func.func @transform_0(%arg0: i32) -> (i32, i32) {
    %c0_i32 = arith.constant 0 : i32
    %c0_i32_0 = arith.constant 0 : i32
    return %arg0, %c0_i32 : i32, i32
  }
  func.func @transform_1(%arg0: i32) -> (i32, i32) {
    %c0_i32 = arith.constant 0 : i32
    %c0_i32_0 = arith.constant 0 : i32
    return %arg0, %c0_i32 : i32, i32
  }
}

</mosaic_0001>

<llo_original>
// kernel: tpu_custom_call.1
$region0: #{tpu_custom_call.1}
  #allocation0 [shape = 'u32[]', space=smem, size = 0x4, offset = 0x4, fixed_abs, tag = 'smem constant byte address 0x4 - core index']
  #allocation1 [shape = 'u32[72,128]{1,0:T(1,128)}', space=vmem, size = 0x9000, scoped, tag = 'internal scratch']
  %s0 = inlined_call_operand.hbm [shape: f32[8,256], index: 0, kind: input, shape index: {}]
  %s1 = inlined_call_operand.hbm [shape: f32[8,256], index: 1, kind: output, shape index: {}]
  %s2 = sld [smem:[#allocation0]]
  $region22: #{tpu_custom_call.1} parent=0
    _
  %s4 = ssub.s32 1, %s2
  %s5 = scalar_select 0, %s4, %s2
  $region1: #{tpu_custom_call.1} parent=0
    #allocation2 [shape = 'u8[8192]{0}', space=vmem, size = 0x2000, scoped, tag = 'input window, operand 0, single buffered']
    #allocation3 [shape = 's32[1]{0}', space=sflag, size = 0x4, scoped, tag = 'scoped memory for tpu_custom_call.1']
    #allocation4 [shape = 's32[1]{0}', space=sflag, size = 0x4, scoped, tag = 'scoped memory for tpu_custom_call.1']
    #allocation5 [shape = 'u8[8192]{0}', space=vmem, size = 0x2000, scoped, tag = 'output window, operand 0, single buffered']
    %6 = vsyncpa [#allocation3], 0
    %7 = vsyncpa [#allocation4], 0
    // Predicated region
    $region2: #{tpu_custom_call.1} parent=1 // pred_check
      _
    $region3: #{tpu_custom_call.1} parent=1 // pred_check_branch
      %9 = sbr.rel (0) target = $region5
    $region4: #{tpu_custom_call.1} parent=1 // pred_region
      %11 = vsyncadd [#allocation3], 0
      %s13 = sshll.u32 %s0, 4
      %s14 = int_to_ptr.hbm [resolvable:$true] %s13
      %s15 = sshll.u32 [#allocation2], 4
      %s16 = int_to_ptr.vmem [resolvable:$true] %s15
      %18 = dma.hbm_to_vmem [thread:$0]  %s14, 256, %s16, [#allocation3]
    $region5: #{tpu_custom_call.1} parent=1 // pred_fallthru
      _
    // Predicated region
    $region6: #{tpu_custom_call.1} parent=1 // pred_check
      _
    $region7: #{tpu_custom_call.1} parent=1 // pred_check_branch
      %20 = sbr.rel (0) target = $region9
    $region8: #{tpu_custom_call.1} parent=1 // pred_region
      %22 = dma.done [#allocation3], 256
    $region9: #{tpu_custom_call.1} parent=1 // pred_fallthru
      _
    %v23 = vlaneseq
    %v24 = vand.u32 %v23, 127
    %v25 = vadd.s32 %v24, 128
    %vm26 = vcmp.lt.s32.totalorder %v24, 0
    %v27 = vsub.s32 0, %v24
    %v28 = vsel %vm26, %v27, %v24
    %v29 = vshrl.u32 %v28, 4
    %v30 = vand.u32 %v28, 15
    %v31 = vsub.s32 0, %v30
    %v32 = vsel %vm26, %v31, %v30
    %vm33 = vcmp.lt.s32.totalorder %v25, 0
    %v34 = vsub.s32 0, %v25
    %v35 = vsel %vm33, %v34, %v25
    %v36 = vshrl.u32 %v35, 4
    %v37 = vand.u32 %v35, 15
    %v38 = vsub.s32 0, %v37
    %v39 = vsel %vm33, %v38, %v37
    %vm40 = vcmp.ne.s32.totalorder %v32, 0
    %vm41 = vcmp.ne.s32.totalorder %v39, 0
    %vm42 = vcmp.lt.s32.totalorder %v32, 0
    %vm43 = vcmp.lt.s32.totalorder %v39, 0
    %vm44 = vmand %vm42, %vm40
    %vm45 = vmand %vm43, %vm41
    %v46 = vadd.s32 %v32, 16
    %v47 = vadd.s32 %v39, 16
    %v48 = vsel %vm44, %v46, %v32
    %v49 = vsel %vm45, %v47, %v39
    %vm50 = vcmp.lt.s32.totalorder %v48, 15
    %vm51 = vcmp.lt.s32.totalorder %v49, 15
    %vm52 = vcmp.ge.s32.totalorder %v48, 1
    %vm53 = vcmp.ge.s32.totalorder %v49, 1
    %vm54 = vcmp.lt.s32.totalorder %v24, 240
    %vm55 = vcmp.lt.s32.totalorder %v25, 240
    %vm56 = vcmp.ge.s32.totalorder %v24, 16
    %vm57 = vcmp.ge.s32.totalorder %v25, 16
    %s58 = smul.u32 0, 8
    %s59 = ssub.s32 8, %s58
    %p60 = scmp.gt.s32.totalorder %s59, 0
    // Predicated region
    $region10: #{tpu_custom_call.1} parent=1 // pred_check
      %p61 = pneg %p60
    $region11: #{tpu_custom_call.1} parent=1 // pred_check_branch
      %63 = sbr.rel (%p61) target = $region13
    $region12: #{tpu_custom_call.1} parent=1 // pred_region
      %v64 = vld [vmem:[#allocation2] sm:$0xff]
      %v65 = vld [vmem:[#allocation2 + $0x8] sm:$0xff]
      %66 = vrot.lane.b32.xlu0 %v64, 127
      %v67 = vpop.permute.xlu0 %66
      %68 = vrot.lane.b32.xlu0 %v65, 127
      %v69 = vpop.permute.xlu0 %68
      %vm70 = vcmp.lt.s32.totalorder %v24, 127
      %v71 = vsel %vm70, %v67, %v69
      %v72 = vsel %vm70, %v69, %v67
      %v73 = vsel %vm50, %v71, 1e+09
      %v74 = vsel %vm51, %v72, 1e+09
      %v75 = vmin.f32 %v64, %v73
      %v76 = vmin.f32 %v65, %v74
      %77 = vrot.lane.b32.xlu0 %v64, 1
      %v78 = vpop.permute.xlu0 %77
      %79 = vrot.lane.b32.xlu0 %v65, 1
      %v80 = vpop.permute.xlu0 %79
      %vm81 = vcmp.lt.s32.totalorder %v24, 1
      %v82 = vsel %vm81, %v78, %v80
      %v83 = vsel %vm81, %v80, %v78
      %v84 = vsel %vm52, %v83, 1e+09
      %v85 = vsel %vm53, %v82, 1e+09
      %v86 = vmin.f32 %v75, %v84
      %v87 = vmin.f32 %v76, %v85
      %88 = vrot.lane.b32.xlu0 %v86, 112
      %v89 = vpop.permute.xlu0 %88
      %90 = vrot.lane.b32.xlu0 %v87, 112
      %v91 = vpop.permute.xlu0 %90
      %vm92 = vcmp.lt.s32.totalorder %v24, 112
      %v93 = vsel %vm92, %v89, %v91
      %v94 = vsel %vm92, %v91, %v89
      %v95 = vsel %vm54, %v93, 1e+09
      %v96 = vsel %vm55, %v94, 1e+09
      %v97 = vmin.f32 %v86, %v95
      %v98 = vmin.f32 %v87, %v96
      %99 = vrot.lane.b32.xlu0 %v86, 16
      %v100 = vpop.permute.xlu0 %99
      %101 = vrot.lane.b32.xlu0 %v87, 16
      %v102 = vpop.permute.xlu0 %101
      %vm103 = vcmp.lt.s32.totalorder %v24, 16
      %v104 = vsel %vm103, %v100, %v102
      %v105 = vsel %vm103, %v102, %v100
      %v106 = vsel %vm56, %v105, 1e+09
      %v107 = vsel %vm57, %v104, 1e+09
      %v108 = vmin.f32 %v97, %v106
      %v109 = vmin.f32 %v98, %v107
      %110 = vst [vmem:[#allocation5] sm:$0xff] %v108
      %111 = vst [vmem:[#allocation5 + $0x8] sm:$0xff] %v109
    $region13: #{tpu_custom_call.1} parent=1 // pred_fallthru
      _
    // Predicated region
    $region14: #{tpu_custom_call.1} parent=1 // pred_check
      _
    $region15: #{tpu_custom_call.1} parent=1 // pred_check_branch
      %113 = sbr.rel (0) target = $region17
    $region16: #{tpu_custom_call.1} parent=1 // pred_region
      %115 = vsyncadd [#allocation4], 0
      %s117 = sshll.u32 [#allocation5], 4
      %s118 = int_to_ptr.vmem [resolvable:$true] %s117
      %s119 = sshll.u32 %s1, 4
      %s120 = int_to_ptr.hbm [resolvable:$true] %s119
      %122 = dma.vmem_to_hbm [thread:$0]  %s118, 256, %s120, [#allocation4]
    $region17: #{tpu_custom_call.1} parent=1 // pred_fallthru
      _
    // Predicated region
    $region18: #{tpu_custom_call.1} parent=1 // pred_check
      _
    $region19: #{tpu_custom_call.1} parent=1 // pred_check_branch
      %124 = sbr.rel (0) target = $region21
    $region20: #{tpu_custom_call.1} parent=1 // pred_region
      %126 = dma.done [#allocation4], 256
    $region21: #{tpu_custom_call.1} parent=1 // pred_fallthru
      _
    %127 = vsyncpa [#allocation3], 1
    %128 = vsyncpa [#allocation4], 1

</llo_original>
